<compile_context>
chip_gen: v5e
topology: v5e:2x2
jax: 0.10.0
libtpu: 0.0.40
codegen_flags: <defaults>
</compile_context>

<pallas_src>
import functools

import jax
import jax.numpy as jnp
from jax.experimental import pallas as pl
from jax.experimental.pallas import tpu as pltpu


def _neg_sq_partial_kernel(neg_ref, out_ref, *, n_rows, n_cols,
                           mask_rows, mask_cols):
    """Accumulate sum((neg - 1e-8)**2) over the N axis into a resident block.

    out_ref is a (1, 8, 128) f32 block that stays resident across the j
    (column / reduction) grid axis; the running scalar is broadcast-added to
    the whole block (unmasked vst), and the wrapper reads element [i, 0, 0].
    """
    i = pl.program_id(0)
    j = pl.program_id(1)

    @pl.when(j == 0)
    def _():
        out_ref[...] = jnp.zeros_like(out_ref)

    x = neg_ref[...].astype(jnp.float32)          # in-kernel cast (VPU, hidden by DMA)
    d = x - jnp.float32(1e-8)
    sq = d * d
    tb, tn = neg_ref.shape

    if mask_rows or mask_cols:
        # Only the last row-block / last column-block can be ragged.
        is_edge = None
        if mask_rows:
            is_edge = i == pl.num_programs(0) - 1
        if mask_cols:
            col_edge = j == pl.num_programs(1) - 1
            is_edge = col_edge if is_edge is None else jnp.logical_or(is_edge, col_edge)

        @pl.when(is_edge)
        def _():
            masked = sq
            if mask_rows:
                rows = jax.lax.broadcasted_iota(jnp.int32, (tb, 1), 0) + i * tb
                masked = jnp.where(rows < n_rows, masked, jnp.float32(0.0))
            if mask_cols:
                cols = jax.lax.broadcasted_iota(jnp.int32, (1, tn), 1) + j * tn
                masked = jnp.where(cols < n_cols, masked, jnp.float32(0.0))
            out_ref[...] += jnp.sum(masked)

        @pl.when(jnp.logical_not(is_edge))
        def _():
            out_ref[...] += jnp.sum(sq)
    else:
        out_ref[...] += jnp.sum(sq)


def _pick_tiles(n_rows, n_cols, itemsize, block_rows=None, block_cols=None,
                target_elems=2 * 1024 * 1024):
    """Pick (TB, TN) obeying the (8,128)/full-dim rule, preferring wide tiles.

    * TN = N whenever that fits the element budget (fully contiguous tile DMA);
      otherwise the largest 128-multiple that fits with one sublane-group of rows.
    * TB rounds to the packed sublane count (8 f32 / 16 bf16 / 32 int8) and is
      capped so the row (parallel) axis has >= 2 blocks when possible.
    """
    sub = 8 * max(1, 4 // itemsize)               # packed sublane multiple
    if block_cols is None:
        if n_cols * sub <= target_elems:
            block_cols = n_cols                   # full width -> contiguous HBM runs
        else:
            block_cols = max(128, (target_elems // sub) // 128 * 128)
    if block_rows is None:
        block_rows = max(sub, (target_elems // max(1, block_cols)) // sub * sub)
        if block_rows >= n_rows:
            if n_rows >= 2 * sub:
                # Keep >=2 row-blocks so the "parallel" axis can use both v7x cores.
                half = -(-n_rows // 2)
                block_rows = -(-half // sub) * sub
            else:
                block_rows = n_rows               # full dim (allowed even if ragged)
    return block_rows, block_cols


def ukgse_loss(pos_score, neg_score, pos_sample, *, block_rows=None,
               block_cols=None, target_elems=2 * 1024 * 1024,
               small_fallback_bytes=2 * 1024 * 1024):
    """JAX/Pallas equivalent of UKGsE_Loss.forward.

    pos_score : (B,) or (B, 1) float — positive-triple scores
    neg_score : (B, N) float         — negative-sample scores (native dtype)
    pos_sample: (B, 4) float         — positive samples, column 3 = confidence
    """
    # loss_1 is O(B) on two tiny vectors -> plain JAX (per review).
    confidence = pos_sample[:, 3].astype(jnp.float32)
    ps = jnp.squeeze(pos_score).astype(jnp.float32)
    loss_1 = jnp.mean((ps - confidence) ** 2)

    B, N = neg_score.shape
    itemsize = jnp.dtype(neg_score.dtype).itemsize
    total_bytes = B * N * itemsize

    # Fast path: tiny inputs are cheaper as one fused XLA reduction.
    if total_bytes <= small_fallback_bytes:
        loss_2 = jnp.mean((neg_score.astype(jnp.float32) - jnp.float32(1e-8)) ** 2)
        return loss_1 + loss_2

    TB, TN = _pick_tiles(B, N, itemsize, block_rows, block_cols, target_elems)
    GB = pl.cdiv(B, TB)
    GN = pl.cdiv(N, TN)
    mask_rows = (B % TB) != 0
    mask_cols = (N % TN) != 0

    kernel = functools.partial(_neg_sq_partial_kernel, n_rows=B, n_cols=N,
                               mask_rows=mask_rows, mask_cols=mask_cols)

    # Explicit VMEM budget: 2x double-buffered native input tile + headroom for
    # the f32 elementwise temporaries + small output/internal scratch.
    tile_native = TB * TN * itemsize
    tile_f32 = TB * TN * 4
    vmem_limit = 2 * tile_native + 3 * tile_f32 + (2 << 20)
    vmem_limit = max(16 << 20, min(vmem_limit, 48 << 20))   # stay under v7x physical

    cost = pl.CostEstimate(
        flops=3 * B * N,                 # sub + mul + add-reduce
        transcendentals=0,
        bytes_accessed=B * N * itemsize + GB * 8 * 128 * 4)

    partials = pl.pallas_call(
        kernel,
        out_shape=jax.ShapeDtypeStruct((GB, 8, 128), jnp.float32),
        grid=(GB, GN),
        in_specs=[pl.BlockSpec((TB, TN), lambda i, j: (i, j))],
        out_specs=pl.BlockSpec((1, 8, 128), lambda i, j: (i, 0, 0)),
        compiler_params=pltpu.CompilerParams(
            dimension_semantics=("parallel", "arbitrary"),
            vmem_limit_bytes=int(vmem_limit)),
        cost_estimate=cost,
    )(neg_score)

    # Every element of row-block i holds the same accumulated value; read [i,0,0].
    # Divide by N then B so each divisor is exactly representable in f32.
    loss_2 = jnp.sum(partials[:, 0, 0]) / jnp.float32(N) / jnp.float32(B)

    return loss_1 + loss_2


def ukgse_loss_ref(pos_score, neg_score, pos_sample):
    """Pure-JAX reference (mirrors the PyTorch code)."""
    confidence = pos_sample[:, 3]
    ps = jnp.squeeze(pos_score)
    loss_1 = jnp.mean((ps - confidence) ** 2)
    loss_2 = jnp.mean((neg_score.astype(jnp.float32) - 1e-8) ** 2)
    return loss_1 + loss_2


if __name__ == "__main__":
    def make_inputs(key, B, N, dtype=jnp.float32):
        k1, k2, k3, k4 = jax.random.split(key, 4)
        pos_score = jax.random.uniform(k1, (B, 1), dtype=jnp.float32)
        neg_score = jax.random.uniform(k2, (B, N), dtype=jnp.float32).astype(dtype)
        ids = jax.random.randint(k3, (B, 3), 0, 100).astype(jnp.float32)
        conf = jax.random.uniform(k4, (B, 1), dtype=jnp.float32)
        pos_sample = jnp.concatenate([ids, conf], axis=1)   # (B, 4), col 3 = confidence
        return pos_score, neg_score, pos_sample

    # Case 1: small aligned shapes, force the Pallas path (single grid step).
    ps1, ns1, smp1 = make_inputs(jax.random.PRNGKey(0), 8, 128)
    out1 = jax.block_until_ready(ukgse_loss(ps1, ns1, smp1, small_fallback_bytes=0))
    ref1 = ukgse_loss_ref(ps1, ns1, smp1)
    assert jnp.allclose(out1, ref1, rtol=1e-5, atol=1e-6), (out1, ref1)

    # Case 2: ragged shapes + forced small blocks -> multi-step grid,
    # edge-only masking on both axes, output-resident accumulator over N.
    ps2, ns2, smp2 = make_inputs(jax.random.PRNGKey(1), 20, 300)
    out2 = jax.block_until_ready(
        ukgse_loss(ps2, ns2, smp2, block_rows=8, block_cols=128,
                   small_fallback_bytes=0))
    ref2 = ukgse_loss_ref(ps2, ns2, smp2)
    assert jnp.allclose(out2, ref2, rtol=1e-5, atol=1e-6), (out2, ref2)

    # Case 3: moderate f32 input above the fast-path threshold -> default tile
    # selection (full-width TN, >=2 parallel row blocks).
    ps3, ns3, smp3 = make_inputs(jax.random.PRNGKey(2), 256, 4096)
    out3 = jax.block_until_ready(ukgse_loss(ps3, ns3, smp3))
    ref3 = ukgse_loss_ref(ps3, ns3, smp3)
    assert jnp.allclose(out3, ref3, rtol=1e-5, atol=1e-6), (out3, ref3)

    # Case 4: bf16 negatives -> in-kernel cast, 16-row sublane rounding.
    ps4, ns4, smp4 = make_inputs(jax.random.PRNGKey(3), 64, 2048, dtype=jnp.bfloat16)
    out4 = jax.block_until_ready(ukgse_loss(ps4, ns4, smp4, small_fallback_bytes=0))
    ref4 = ukgse_loss_ref(ps4, ns4, smp4)
    assert jnp.allclose(out4, ref4, rtol=1e-5, atol=1e-6), (out4, ref4)

    # Case 5: default small-input fast path (plain-JAX loss_2).
    out5 = jax.block_until_ready(ukgse_loss(ps1, ns1, smp1))
    assert jnp.allclose(out5, ref1, rtol=1e-5, atol=1e-6), (out5, ref1)

    print("KERNEL_OK")
</pallas_src>

<mosaic_0001>
module attributes {stable_mosaic.version = 11 : i64} {
  func.func @_neg_sq_partial_kernel(%arg0: i32, %arg1: i32, %arg2: memref<8x128xf32, #tpu.memory_space<vmem>>, %arg3: memref<1x8x128xf32, #tpu.memory_space<vmem>>) attributes {dimension_semantics = [#tpu.dimension_semantics<parallel>, #tpu.dimension_semantics<arbitrary>], iteration_bounds = array<i64: 1, 1>, scalar_prefetch = 0 : i64, scratch_operands = 0 : i64, tpu.core_type = #tpu.core_type<tc>, window_params = [{transform_indices = @transform_0, window_bounds = array<i64: 8, 128>}, {transform_indices = @transform_1, window_bounds = array<i64: 1, 8, 128>}]} {
    %c0_i32 = arith.constant 0 : i32
    %0 = arith.cmpi eq, %arg1, %c0_i32 : i32
    %1 = arith.extui %0 : i1 to i32
    %c0_i32_0 = arith.constant 0 : i32
    %2 = arith.cmpi ne, %1, %c0_i32_0 : i32
    scf.if %2 {
      %cst_9 = arith.constant 0.000000e+00 : f32
      %15 = vector.broadcast %cst_9 : f32 to vector<1x8x128xf32>
      %c0_10 = arith.constant 0 : index
      %c0_11 = arith.constant 0 : index
      %c0_12 = arith.constant 0 : index
      %16 = vector.load %arg3[%c0_10, %c0_11, %c0_12] : memref<1x8x128xf32, #tpu.memory_space<vmem>>, vector<1x8x128xf32>
      tpu.vector_store %arg3[%c0_10, %c0_11, %c0_12], %15 {strides = array<i32>} : memref<1x8x128xf32, #tpu.memory_space<vmem>>, vector<1x8x128xf32>,
    } else {
    }
    %c0 = arith.constant 0 : index
    %c0_1 = arith.constant 0 : index
    %3 = vector.load %arg2[%c0, %c0_1] : memref<8x128xf32, #tpu.memory_space<vmem>>, vector<8x128xf32>
    %cst = arith.constant 9.99999993E-9 : f32
    %4 = vector.broadcast %cst : f32 to vector<8x128xf32>
    %5 = arith.subf %3, %4 : vector<8x128xf32>
    %6 = arith.mulf %5, %5 : vector<8x128xf32>
    %c0_2 = arith.constant 0 : index
    %c0_3 = arith.constant 0 : index
    %c0_4 = arith.constant 0 : index
    %7 = vector.load %arg3[%c0_2, %c0_3, %c0_4] : memref<1x8x128xf32, #tpu.memory_space<vmem>>, vector<1x8x128xf32>
    %8 = vector.shape_cast %6 : vector<8x128xf32> to vector<1x8x128xf32>
    %cst_5 = arith.constant dense<0.000000e+00> : vector<1xf32>
    %9 = vector.multi_reduction <add>, %8, %cst_5 [1, 2] : vector<1x8x128xf32> to vector<1xf32>
    %10 = vector.shape_cast %9 : vector<1xf32> to vector<1x1x1xf32>
    %11 = vector.extract %10[0, 0, 0] : f32 from vector<1x1x1xf32>
    %12 = vector.broadcast %11 : f32 to vector<1x8x128xf32>
    %13 = arith.addf %7, %12 : vector<1x8x128xf32>
    %c0_6 = arith.constant 0 : index
    %c0_7 = arith.constant 0 : index
    %c0_8 = arith.constant 0 : index
    %14 = vector.load %arg3[%c0_6, %c0_7, %c0_8] : memref<1x8x128xf32, #tpu.memory_space<vmem>>, vector<1x8x128xf32>
    tpu.vector_store %arg3[%c0_6, %c0_7, %c0_8], %13 {strides = array<i32>} : memref<1x8x128xf32, #tpu.memory_space<vmem>>, vector<1x8x128xf32>,
    return
  }
  func.func @transform_0(%arg0: i32, %arg1: i32) -> (i32, i32) {
    %c0_i32 = arith.constant 0 : i32
    return %arg0, %arg1 : i32, i32
  }
  func.func @transform_1(%arg0: i32, %arg1: i32) -> (i32, i32, i32) {
    %c0_i32 = arith.constant 0 : i32
    %c0_i32_0 = arith.constant 0 : i32
    %c0_i32_1 = arith.constant 0 : i32
    return %arg0, %c0_i32, %c0_i32_0 : i32, i32, i32
  }
}

</mosaic_0001>

<llo_original>
// kernel: tpu_custom_call.1
$region0: #{tpu_custom_call.1}
  #allocation0 [shape = 'u32[]', space=smem, size = 0x4, offset = 0x4, fixed_abs, tag = 'smem constant byte address 0x4 - core index']
  #allocation1 [shape = 'u32[72,128]{1,0:T(1,128)}', space=vmem, size = 0x9000, scoped, tag = 'internal scratch']
  %s0 = inlined_call_operand.hbm [shape: f32[8,128], index: 0, kind: input, shape index: {}]
  %s1 = inlined_call_operand.hbm [shape: f32[1,8,128], index: 1, kind: output, shape index: {}]
  %s2 = sld [smem:[#allocation0]]
  $region22: #{tpu_custom_call.1} parent=0
    _
  %s4 = ssub.s32 1, %s2
  %s5 = scalar_select 0, %s4, %s2
  $region1: #{tpu_custom_call.1} parent=0
    #allocation2 [shape = 'u8[4096]{0}', space=vmem, size = 0x1000, scoped, tag = 'input window, operand 0, single buffered']
    #allocation3 [shape = 's32[1]{0}', space=sflag, size = 0x4, scoped, tag = 'scoped memory for tpu_custom_call.1']
    #allocation4 [shape = 's32[1]{0}', space=sflag, size = 0x4, scoped, tag = 'scoped memory for tpu_custom_call.1']
    #allocation5 [shape = 'u8[4096]{0}', space=vmem, size = 0x1000, scoped, tag = 'output window, operand 0, single buffered']
    %6 = vsyncpa [#allocation3], 0
    %7 = vsyncpa [#allocation4], 0
    // Predicated region
    $region2: #{tpu_custom_call.1} parent=1 // pred_check
      _
    $region3: #{tpu_custom_call.1} parent=1 // pred_check_branch
      %9 = sbr.rel (0) target = $region5
    $region4: #{tpu_custom_call.1} parent=1 // pred_region
      %11 = vsyncadd [#allocation3], 0
      %s13 = sshll.u32 %s0, 4
      %s14 = int_to_ptr.hbm [resolvable:$true] %s13
      %s15 = sshll.u32 [#allocation2], 4
      %s16 = int_to_ptr.vmem [resolvable:$true] %s15
      %18 = dma.hbm_to_vmem [thread:$0]  %s14, 128, %s16, [#allocation3]
    $region5: #{tpu_custom_call.1} parent=1 // pred_fallthru
      _
    // Predicated region
    $region6: #{tpu_custom_call.1} parent=1 // pred_check
      _
    $region7: #{tpu_custom_call.1} parent=1 // pred_check_branch
      %20 = sbr.rel (0) target = $region9
    $region8: #{tpu_custom_call.1} parent=1 // pred_region
      %22 = dma.done [#allocation3], 128
    $region9: #{tpu_custom_call.1} parent=1 // pred_fallthru
      _
    %p23 = scmp.eq.s32.totalorder 0, 0
    // Predicated region
    $region10: #{tpu_custom_call.1} parent=1 // pred_check
      %p24 = pneg %p23
    $region11: #{tpu_custom_call.1} parent=1 // pred_check_branch
      %26 = sbr.rel (%p24) target = $region13
    $region12: #{tpu_custom_call.1} parent=1 // pred_region
      %27 = vst [vmem:[#allocation5] sm:$0xff] 0.0
    $region13: #{tpu_custom_call.1} parent=1 // pred_fallthru
      _
    %v28 = vld [vmem:[#allocation2] sm:$0xff]
    %v29 = vsub.f32 %v28, 1e-08
    %v30 = vmul.f32 %v29, %v29
    %v31 = vld [vmem:[#allocation5] sm:$0xff]
    %32 = vadd.xlane.f32.xlu0 %v30
    %v33 = vpop.xlane.xlu0 %32
    %v34 = vrot.slane %v33, 4
    %v35 = vadd.f32 %v33, %v34
    %v36 = vrot.slane %v35, 2
    %v37 = vadd.f32 %v35, %v36
    %v38 = vrot.slane %v37, 1
    %v39 = vadd.f32 %v37, %v38
    %s40 = vtos %v39
    %v41 = vstv %s40
    %v42 = vadd.f32 %v31, %v41
    %43 = vst [vmem:[#allocation5] sm:$0xff] %v42
    // Predicated region
    $region14: #{tpu_custom_call.1} parent=1 // pred_check
      _
    $region15: #{tpu_custom_call.1} parent=1 // pred_check_branch
      %45 = sbr.rel (0) target = $region17
    $region16: #{tpu_custom_call.1} parent=1 // pred_region
      %47 = vsyncadd [#allocation4], 0
      %s49 = sshll.u32 [#allocation5], 4
      %s50 = int_to_ptr.vmem [resolvable:$true] %s49
      %s51 = sshll.u32 %s1, 4
      %s52 = int_to_ptr.hbm [resolvable:$true] %s51
      %54 = dma.vmem_to_hbm [thread:$0]  %s50, 128, %s52, [#allocation4]
    $region17: #{tpu_custom_call.1} parent=1 // pred_fallthru
      _
    // Predicated region
    $region18: #{tpu_custom_call.1} parent=1 // pred_check
      _
    $region19: #{tpu_custom_call.1} parent=1 // pred_check_branch
      %56 = sbr.rel (0) target = $region21
    $region20: #{tpu_custom_call.1} parent=1 // pred_region
      %58 = dma.done [#allocation4], 128
    $region21: #{tpu_custom_call.1} parent=1 // pred_fallthru
      _
    %59 = vsyncpa [#allocation3], 1
    %60 = vsyncpa [#allocation4], 1

</llo_original>
